<compile_context>
chip_gen: v6e
topology: v6e:2x2x1
jax: 0.10.0
libtpu: 0.0.40
codegen_flags: <defaults>
</compile_context>

<pallas_src>
import functools

import jax
import jax.numpy as jnp
from jax.experimental import pallas as pl
from jax.experimental.pallas import tpu as pltpu


def _round_up(x: int, m: int) -> int:
    return ((x + m - 1) // m) * m


def _vmem_cap_bytes() -> int:
    """~70% of physical VMEM when queryable, else a conservative 32 MiB (safe on v7x)."""
    try:
        cap = getattr(pltpu.get_tpu_info(), "vmem_capacity_bytes", None)
        if cap:
            return max(16 << 20, int(cap) * 7 // 10)
    except Exception:
        pass
    return 32 << 20


def _choose_tiles(n_rows, hw, elem_bytes, target_bytes, rows_tile=None, hw_tile=None):
    """Pick (rows_tile, hw_tile) for the (B*C, H*W) pooling kernel.

    rows_tile is a multiple of 8 (or the full row extent), hw_tile a multiple of
    128 (or the full spatial extent), targeting ~target_bytes per input block so
    the ~0.35 us per-grid-step overhead is amortized over one large DMA.
    """
    target_bytes = max(int(target_bytes), 4096)

    # Lane (spatial) tile.
    if hw_tile is not None:                      # user override: round up to 128
        hw_tile = max(128, _round_up(int(hw_tile), 128))
        hw_tile = hw if hw_tile >= hw else hw_tile
    elif 8 * hw * elem_bytes <= target_bytes:
        hw_tile = hw                             # whole spatial extent per block
    else:
        hw_tile = max(128, min(hw, target_bytes // (8 * elem_bytes)) // 128 * 128)

    # Sublane (row = flattened batch*channel) tile.
    if rows_tile is not None:                    # user override: round up to 8
        rows_tile = max(8, _round_up(int(rows_tile), 8))
        rows_tile = n_rows if rows_tile >= n_rows else rows_tile
    else:
        # per-row VMEM cost: input row (double-buffered) + lane-padded f32
        # output row (128 lanes * 4 B * 2 buffers).
        per_row = hw_tile * elem_bytes + 512
        rows_fit = max(8, (target_bytes // per_row) // 8 * 8)
        rows_tile = n_rows if n_rows <= rows_fit else rows_fit
        # v7x megacore: keep >= 2 blocks on the parallel axis when possible
        # (harmless single extra grid step on single-TC v5e/v6e).
        if n_rows >= 16 and pl.cdiv(n_rows, rows_tile) < 2:
            rows_tile = max(8, _round_up(pl.cdiv(n_rows, 2), 8))
    return rows_tile, hw_tile


def _pool_sum_kernel(x_ref, out_ref, *, hw_valid_last, mask_last):
    """Row-wise spatial sum: out[r, 0] = sum_j x[r, j], accumulated over H*W tiles."""
    k = pl.program_id(1)

    @pl.when(k == 0)
    def _init():
        out_ref[...] = jnp.zeros_like(out_ref)

    def _accumulate(x):
        if x.dtype != jnp.float32:               # accumulate in f32 regardless of input dtype
            x = x.astype(jnp.float32)
        out_ref[...] += jnp.sum(x, axis=-1, keepdims=True)

    if mask_last:                                 # static: only when H*W % hw_tile != 0
        last = pl.num_programs(1) - 1

        @pl.when(k != last)
        def _full_tile():
            _accumulate(x_ref[...])

        @pl.when(k == last)
        def _partial_tile():
            x = x_ref[...]
            col = jax.lax.broadcasted_iota(jnp.int32, x.shape, 1)
            _accumulate(jnp.where(col < hw_valid_last, x, jnp.zeros_like(x)))
    else:
        _accumulate(x_ref[...])


def _head_kernel(pooled_ref, w_ref, b_ref, out_ref):
    """softmax(pooled @ w + b). Padded action lanes carry a -1e30 bias."""
    logits = jnp.dot(pooled_ref[...], w_ref[...], preferred_element_type=jnp.float32)
    logits = logits + b_ref[...]
    m = jnp.max(logits, axis=-1, keepdims=True)
    e = jnp.exp(logits - m)
    # Exact normalization (off the hot path) so each row sums to 1.
    out_ref[...] = e / jnp.sum(e, axis=-1, keepdims=True)


def action_proposal_given_state(state_nchw, weight_ca, bias_a, *,
                                target_block_bytes=4 << 20,
                                rows_tile=None, hw_tile=None):
    """softmax(mean_{H,W}(state) @ weight + bias) for state (B, C, H, W)."""
    B, C, H, W = state_nchw.shape
    Cw, A = weight_ca.shape
    assert Cw == C, "weight must be (C, A)"
    hw = H * W
    n_rows = B * C
    elem = jnp.dtype(state_nchw.dtype).itemsize
    vmem_cap = _vmem_cap_bytes()

    # ---------- Stage 1: bandwidth-bound spatial sum pooling ----------
    # Free reshape of the contiguous state: no pad, no dtype cast of the big tensor.
    x2d = state_nchw.reshape(n_rows, hw)

    target = min(int(target_block_bytes), vmem_cap // 6)
    r_tile, s_tile = _choose_tiles(n_rows, hw, elem, target, rows_tile, hw_tile)
    n_r = pl.cdiv(n_rows, r_tile)
    n_hw = pl.cdiv(hw, s_tile)
    hw_valid_last = hw - (n_hw - 1) * s_tile
    mask_last = hw_valid_last != s_tile

    need1 = 2 * r_tile * s_tile * elem + 2 * r_tile * 128 * 4
    vmem1 = int(min(max(2 * need1, 16 << 20), vmem_cap))

    sums = pl.pallas_call(
        functools.partial(_pool_sum_kernel,
                          hw_valid_last=hw_valid_last, mask_last=mask_last),
        out_shape=jax.ShapeDtypeStruct((n_rows, 1), jnp.float32),
        grid=(n_r, n_hw),
        in_specs=[pl.BlockSpec((r_tile, s_tile), lambda i, k: (i, k))],
        out_specs=pl.BlockSpec((r_tile, 1), lambda i, k: (i, 0)),
        compiler_params=pltpu.CompilerParams(
            dimension_semantics=("parallel", "arbitrary"),
            vmem_limit_bytes=vmem1),
    )(x2d)

    # ---------- Stage 2: tiny linear head + softmax (off the hot path) ----------
    a_pad = _round_up(A, 128)     # lane-dense output / MXU-friendly N
    c_pad = _round_up(C, 8)
    b_pad = _round_up(B, 8)

    pooled = sums.reshape(B, C)                                    # spatial sums
    pooled = jnp.pad(pooled, ((0, b_pad - B), (0, c_pad - C)))     # tiny (B, C) tensor
    # Fold the 1/(H*W) mean factor into the small weight once.
    w = jnp.pad(weight_ca.astype(jnp.float32) / float(hw),
                ((0, c_pad - C), (0, a_pad - A)))
    bias = jnp.pad(bias_a.astype(jnp.float32), (0, a_pad - A),
                   constant_values=-1e30).reshape(1, a_pad)

    b_tile = b_pad if b_pad <= 256 else 256
    n_b = pl.cdiv(b_pad, b_tile)
    need2 = 4 * 2 * (b_tile * c_pad + c_pad * a_pad + a_pad + b_tile * a_pad)
    vmem2 = int(min(max(2 * need2, 8 << 20), vmem_cap))

    probs = pl.pallas_call(
        _head_kernel,
        out_shape=jax.ShapeDtypeStruct((b_pad, a_pad), jnp.float32),
        grid=(n_b,),
        in_specs=[
            pl.BlockSpec((b_tile, c_pad), lambda i: (i, 0)),
            pl.BlockSpec((c_pad, a_pad), lambda i: (0, 0)),   # resident across grid
            pl.BlockSpec((1, a_pad), lambda i: (0, 0)),       # resident across grid
        ],
        out_specs=pl.BlockSpec((b_tile, a_pad), lambda i: (i, 0)),
        compiler_params=pltpu.CompilerParams(
            dimension_semantics=("parallel",),
            vmem_limit_bytes=vmem2),
    )(pooled, w, bias)

    return probs[:B, :A]


def _reference(state_nchw, weight_ca, bias_a):
    pooled = jnp.mean(state_nchw.astype(jnp.float32), axis=(2, 3))   # (B, C)
    return jax.nn.softmax(pooled @ weight_ca + bias_a[None, :], axis=-1)


if __name__ == "__main__":
    key = jax.random.PRNGKey(0)
    k_x, k_w, k_b, k_x2, k_w2, k_b2 = jax.random.split(key, 6)

    # Small shapes consistent with the module: batch=2, channels=4, spatial=16,
    # 8 proposed actions.
    B, C, H, W, A = 2, 4, 16, 16, 8
    state = jax.random.normal(k_x, (B, C, H, W), dtype=jnp.float32)
    weight = 0.1 * jax.random.normal(k_w, (C, A), dtype=jnp.float32)
    bias = 0.01 * jax.random.normal(k_b, (A,), dtype=jnp.float32)
    ref = _reference(state, weight, bias)

    # 1) Default auto-tiling (single block for this toy size).
    out = jax.block_until_ready(action_proposal_given_state(state, weight, bias))
    assert out.shape == (B, A)
    assert jnp.allclose(jnp.sum(out, axis=-1), 1.0, atol=1e-5)
    assert jnp.allclose(out, ref, atol=1e-4, rtol=1e-3)

    # 2) Tiny block target so the multi-step reduction / accumulator path runs.
    out2 = jax.block_until_ready(
        action_proposal_given_state(state, weight, bias, target_block_bytes=4096))
    assert jnp.allclose(out2, ref, atol=1e-4, rtol=1e-3)

    # 3) Odd shapes + explicit spatial tile: exercises the masked last spatial
    #    tile and the padded batch/channel/action paths.
    B3, C3, H3, W3, A3 = 3, 5, 10, 20, 10
    state3 = jax.random.normal(k_x2, (B3, C3, H3, W3), dtype=jnp.float32)
    weight3 = 0.1 * jax.random.normal(k_w2, (C3, A3), dtype=jnp.float32)
    bias3 = 0.01 * jax.random.normal(k_b2, (A3,), dtype=jnp.float32)
    out3 = jax.block_until_ready(
        action_proposal_given_state(state3, weight3, bias3, hw_tile=128))
    assert out3.shape == (B3, A3)
    assert jnp.allclose(out3, _reference(state3, weight3, bias3), atol=1e-4, rtol=1e-3)

    print("KERNEL_OK")
</pallas_src>

<mosaic_0001>
module attributes {stable_mosaic.version = 11 : i64} {
  func.func @_pool_sum_kernel(%arg0: i32, %arg1: i32, %arg2: memref<8x256xf32, #tpu.memory_space<vmem>>, %arg3: memref<8x1xf32, #tpu.memory_space<vmem>>) attributes {dimension_semantics = [#tpu.dimension_semantics<parallel>, #tpu.dimension_semantics<arbitrary>], iteration_bounds = array<i64: 1, 1>, scalar_prefetch = 0 : i64, scratch_operands = 0 : i64, tpu.core_type = #tpu.core_type<tc>, window_params = [{transform_indices = @transform_0, window_bounds = array<i64: 8, 256>}, {transform_indices = @transform_1, window_bounds = array<i64: 8, 1>}]} {
    %c0_i32 = arith.constant 0 : i32
    %0 = arith.cmpi eq, %arg1, %c0_i32 : i32
    %1 = arith.extui %0 : i1 to i32
    %c0_i32_0 = arith.constant 0 : i32
    %2 = arith.cmpi ne, %1, %c0_i32_0 : i32
    scf.if %2 {
      %cst_6 = arith.constant 0.000000e+00 : f32
      %9 = vector.broadcast %cst_6 : f32 to vector<8x1xf32>
      %c0_7 = arith.constant 0 : index
      %c0_8 = arith.constant 0 : index
      %10 = vector.load %arg3[%c0_7, %c0_8] : memref<8x1xf32, #tpu.memory_space<vmem>>, vector<8x1xf32>
      tpu.vector_store %arg3[%c0_7, %c0_8], %9 {strides = array<i32>} : memref<8x1xf32, #tpu.memory_space<vmem>>, vector<8x1xf32>,
    } else {
    }
    %c0 = arith.constant 0 : index
    %c0_1 = arith.constant 0 : index
    %3 = vector.load %arg2[%c0, %c0_1] : memref<8x256xf32, #tpu.memory_space<vmem>>, vector<8x256xf32>
    %c0_2 = arith.constant 0 : index
    %c0_3 = arith.constant 0 : index
    %4 = vector.load %arg3[%c0_2, %c0_3] : memref<8x1xf32, #tpu.memory_space<vmem>>, vector<8x1xf32>
    %cst = arith.constant dense<0.000000e+00> : vector<8xf32>
    %5 = vector.multi_reduction <add>, %3, %cst [1] : vector<8x256xf32> to vector<8xf32>
    %6 = vector.shape_cast %5 : vector<8xf32> to vector<8x1xf32>
    %7 = arith.addf %4, %6 : vector<8x1xf32>
    %c0_4 = arith.constant 0 : index
    %c0_5 = arith.constant 0 : index
    %8 = vector.load %arg3[%c0_4, %c0_5] : memref<8x1xf32, #tpu.memory_space<vmem>>, vector<8x1xf32>
    tpu.vector_store %arg3[%c0_4, %c0_5], %7 {strides = array<i32>} : memref<8x1xf32, #tpu.memory_space<vmem>>, vector<8x1xf32>,
    return
  }
  func.func @transform_0(%arg0: i32, %arg1: i32) -> (i32, i32) {
    %c0_i32 = arith.constant 0 : i32
    return %arg0, %arg1 : i32, i32
  }
  func.func @transform_1(%arg0: i32, %arg1: i32) -> (i32, i32) {
    %c0_i32 = arith.constant 0 : i32
    %c0_i32_0 = arith.constant 0 : i32
    return %arg0, %c0_i32 : i32, i32
  }
}

</mosaic_0001>

<llo_original>
// kernel: tpu_custom_call.1
$region0: #{tpu_custom_call.1}
  #allocation0 [shape = 'u32[]', space=smem, size = 0x4, offset = 0x4, fixed_abs, tag = 'smem constant byte address 0x4 - core index']
  #allocation1 [shape = 'u32[144,128]{1,0:T(1,128)}', space=vmem, size = 0x12000, scoped, tag = 'internal scratch']
  %s0 = inlined_call_operand.hbm [shape: f32[8,256], index: 0, kind: input, shape index: {}]
  %s1 = inlined_call_operand.vmem [shape: f32[8,1], index: 1, kind: output, shape index: {}]
  %s2 = sld [smem:[#allocation0]]
  $region22: #{tpu_custom_call.1} parent=0
    _
  %s4 = ssub.s32 1, %s2
  %s5 = scalar_select 0, %s4, %s2
  $region1: #{tpu_custom_call.1} parent=0
    #allocation2 [shape = 'u8[8192]{0}', space=vmem, size = 0x2000, scoped, tag = 'input window, operand 0, single buffered']
    #allocation3 [shape = 's32[1]{0}', space=sflag, size = 0x4, scoped, tag = 'scoped memory for tpu_custom_call.1']
    %6 = vsyncpa [#allocation3], 0
    // Predicated region
    $region2: #{tpu_custom_call.1} parent=1 // pred_check
      _
    $region3: #{tpu_custom_call.1} parent=1 // pred_check_branch
      %8 = sbr.rel (0) target = $region5
    $region4: #{tpu_custom_call.1} parent=1 // pred_region
      %s10 = ssub.s32 256, 256
      %11 = vsyncadd [#allocation3], %s10
      %s13 = sshll.u32 [#allocation2], 4
      %s14 = int_to_ptr.vmem [resolvable:$true] %s13
      %16 = dma.hbm_to_vmem [thread:$0]  %s0, 256, %s14, [#allocation3]
    $region5: #{tpu_custom_call.1} parent=1 // pred_fallthru
      _
    // Predicated region
    $region6: #{tpu_custom_call.1} parent=1 // pred_check
      _
    $region7: #{tpu_custom_call.1} parent=1 // pred_check_branch
      %18 = sbr.rel (0) target = $region9
    $region8: #{tpu_custom_call.1} parent=1 // pred_region
      %19 = dma.done [#allocation3], 256
    $region9: #{tpu_custom_call.1} parent=1 // pred_fallthru
      _
    %p20 = scmp.eq.s32.totalorder 0, 0
    // Predicated region
    $region10: #{tpu_custom_call.1} parent=1 // pred_check
      %p21 = pneg %p20
    $region11: #{tpu_custom_call.1} parent=1 // pred_check_branch
      %23 = sbr.rel (%p21) target = $region13
    $region12: #{tpu_custom_call.1} parent=1 // pred_region
      %vm24 = vcmask 7168
      %25 = vst.msk [vmem:[%s1] sm:$0xff] %vm24, 0.0
    $region13: #{tpu_custom_call.1} parent=1 // pred_fallthru
      _
    %v26 = vld [vmem:[#allocation2] sm:$0xff]
    %v27 = vld [vmem:[#allocation2 + $0x8] sm:$0xff]
    %v28 = vld [vmem:[%s1] sm:$0xff]
    %v29 = vadd.f32 %v26, %v27
    %30 = vadd.xlane.f32.xlu0 %v29
    %v31 = vpop.xlane.xlu0 %30
    %v32 = vadd.f32 %v28, %v31
    %vm33 = vcmask 7168
    %34 = vst.msk [vmem:[%s1] sm:$0xff] %vm33, %v32
    // Predicated region
    $region14: #{tpu_custom_call.1} parent=1 // pred_check
      _
    $region15: #{tpu_custom_call.1} parent=1 // pred_check_branch
      %36 = sbr.rel (0) target = $region17
    $region16: #{tpu_custom_call.1} parent=1 // pred_region
      _
    $region17: #{tpu_custom_call.1} parent=1 // pred_fallthru
      _
    // Predicated region
    $region18: #{tpu_custom_call.1} parent=1 // pred_check
      _
    $region19: #{tpu_custom_call.1} parent=1 // pred_check_branch
      %38 = sbr.rel (0) target = $region21
    $region20: #{tpu_custom_call.1} parent=1 // pred_region
      _
    $region21: #{tpu_custom_call.1} parent=1 // pred_fallthru
      _
    %39 = vsyncpa [#allocation3], 1

</llo_original>
